<compile_context>
chip_gen: v5e
topology: v5e:2x2
jax: 0.10.0
libtpu: 0.0.40
codegen_flags: <defaults>
</compile_context>

<pallas_src>
import math
import numpy as np
import jax
import jax.numpy as jnp
from jax.experimental import pallas as pl
from jax.experimental.pallas import tpu as pltpu


def build_pe(embed_dim: int, board_size: int = 8) -> np.ndarray:
    """Deterministic re-implementation of the PyTorch __init__ buffer."""
    assert embed_dim % 4 == 0, "embed_dim must be a multiple of 4 (as in the PyTorch module)"
    pe = np.zeros((board_size, board_size, embed_dim), dtype=np.float32)
    # row-wise (first spatial axis) encoding on channels i, i+1 for i in 0,4,8,...
    for pos in range(board_size):
        for i in range(0, embed_dim, 4):
            pe[pos, :, i] = math.sin(pos / 10000 ** (i / embed_dim))
            pe[pos, :, i + 1] = math.cos(pos / 10000 ** (i / embed_dim))
    # column-wise (second spatial axis) encoding on channels i, i+1 for i in 2,6,10,...
    for pos in range(board_size):
        for i in range(2, embed_dim, 4):
            pe[:, pos, i] = math.sin(pos / 10000 ** (i / embed_dim))
            pe[:, pos, i + 1] = math.cos(pos / 10000 ** (i / embed_dim))
    return pe


def _add_pe_kernel(x_ref, pe_ref, o_ref):
    # x_ref: (rows, L) lane-dense block; pe_ref: (1, L) f32, broadcast over the
    # sublane axis by the VPU (free). Accumulate in f32 (matches PyTorch adding
    # the f32 buffer), single cast on store.
    o_ref[...] = (x_ref[...].astype(jnp.float32) + pe_ref[...]).astype(o_ref.dtype)


def positional_encoding_forward(x: jax.Array, pe_flat: jax.Array,
                                *, min_pallas_bytes: int = 0) -> jax.Array:
    """x: (B, H, W, D); pe_flat: (1, H*W*D) float32 (cached at module init)."""
    B, H, W, D = x.shape
    L = H * W * D
    assert pe_flat.shape == (1, L)

    itemsize = jnp.dtype(x.dtype).itemsize
    total_bytes = B * L * itemsize

    if total_bytes < min_pallas_bytes:
        # Tiny slab: pallas_call dispatch (+reshape HLOs) costs far more than
        # the ~0.1 us of HBM traffic — let XLA fuse the broadcast add instead.
        return (x.astype(jnp.float32)
                + pe_flat.reshape(H, W, D)).astype(x.dtype)

    # Lane-dense flatten: last dim L (e.g. 2048) is a multiple of 128, so every
    # store is a full-width vst (no masked vst.msk partial stores).
    x2 = x.reshape(B, L)

    # dtype-aware min sublane tile: 8 for 4-byte, 16 for 2-byte, 32 for 1-byte.
    sub = max(8, 32 // itemsize)
    row_bytes = L * itemsize

    if total_bytes <= (1 << 20):
        # Small: one full-extent block (full array dims are always a legal tile).
        block_rows, grid = B, (1,)
    else:
        # Always >= 2 grid steps so the "parallel" axis shards across both
        # TensorCores on v7x; cap each block at ~2 MiB (mem-bound throughput
        # knee; 2 inputs + output double-buffered stays well under v5e's 16 MiB
        # scoped VMEM default and v7x's 32 MiB).
        max_rows = max(sub, ((2 << 20) // row_bytes // sub) * sub)
        half_rows = ((pl.cdiv(B, 2) + sub - 1) // sub) * sub
        block_rows = max(sub, min(max_rows, half_rows))
        grid = (pl.cdiv(B, block_rows),)

    out2 = pl.pallas_call(
        _add_pe_kernel,
        out_shape=jax.ShapeDtypeStruct((B, L), x.dtype),
        grid=grid,
        in_specs=[
            pl.BlockSpec((block_rows, L), lambda i: (i, 0)),   # x: row-blocked, lane-dense
            pl.BlockSpec((1, L), lambda i: (0, 0)),            # pe: one constant f32 row
        ],
        out_specs=pl.BlockSpec((block_rows, L), lambda i: (i, 0)),
        # Correct without donation; a true in-place HBM update when the caller
        # donates x (jax.jit donate_argnums) at the boundary.
        input_output_aliases={0: 0},
        compiler_params=pltpu.CompilerParams(
            dimension_semantics=("parallel",),
        ),
    )(x2, pe_flat)

    return out2.reshape(B, H, W, D)


class PositionalEncoding:
    """2D positional encoding for a chess board — Pallas TPU forward."""

    def __init__(self, embed_dim: int, board_size: int = 8):
        self.embed_dim = embed_dim
        self.board_size = board_size
        pe_np = build_pe(embed_dim, board_size)
        self.pe = jnp.asarray(pe_np)                          # (H, W, D) f32
        # Cached lane-dense flattened PE row (built once, reused every call).
        self.pe_flat = jnp.asarray(pe_np.reshape(1, -1))      # (1, H*W*D) f32

    def __call__(self, x: jax.Array, *, min_pallas_bytes: int = 0) -> jax.Array:
        return positional_encoding_forward(x, self.pe_flat,
                                           min_pallas_bytes=min_pallas_bytes)


if __name__ == "__main__":
    embed_dim = 32
    board_size = 8

    module = PositionalEncoding(embed_dim, board_size)
    key = jax.random.PRNGKey(0)

    # --- Case 1: the module's native size (batch=2, f32), Pallas path forced. ---
    k1, k2 = jax.random.split(key)
    x_small = jax.random.normal(k1, (2, board_size, board_size, embed_dim),
                                dtype=jnp.float32)
    ref_small = x_small + module.pe[None]
    out_small = jax.block_until_ready(module(x_small))
    assert out_small.shape == x_small.shape
    assert jnp.allclose(out_small, ref_small, atol=1e-6), "small-batch mismatch"

    # --- Case 2: large ragged batch (f32) to exercise the multi-block grid
    #     (>= 2 parallel steps, ~2 MiB blocks, OOB-padded last block). ---
    x_big = jax.random.normal(k2, (500, board_size, board_size, embed_dim),
                              dtype=jnp.float32)
    ref_big = x_big + module.pe[None]
    out_big = jax.block_until_ready(module(x_big))
    assert out_big.shape == x_big.shape
    assert jnp.allclose(out_big, ref_big, atol=1e-6), "large-batch mismatch"

    # --- Case 3: bf16 activations to exercise dtype-aware sublane alignment
    #     and the f32-accumulate path. ---
    x_bf16 = x_big[:384].astype(jnp.bfloat16)
    ref_bf16 = (x_bf16.astype(jnp.float32) + module.pe[None]).astype(jnp.bfloat16)
    out_bf16 = jax.block_until_ready(module(x_bf16))
    assert out_bf16.shape == x_bf16.shape
    assert jnp.allclose(out_bf16.astype(jnp.float32),
                        ref_bf16.astype(jnp.float32), atol=1e-2), "bf16 mismatch"

    print("KERNEL_OK")
</pallas_src>

<mosaic_0001>
module attributes {stable_mosaic.version = 11 : i64} {
  func.func @_add_pe_kernel(%arg0: i32, %arg1: memref<2x2048xf32, #tpu.memory_space<vmem>>, %arg2: memref<1x2048xf32, #tpu.memory_space<vmem>>, %arg3: memref<2x2048xf32, #tpu.memory_space<vmem>>) attributes {dimension_semantics = [#tpu.dimension_semantics<parallel>], iteration_bounds = array<i64: 1>, scalar_prefetch = 0 : i64, scratch_operands = 0 : i64, tpu.core_type = #tpu.core_type<tc>, window_params = [{transform_indices = @transform_0, window_bounds = array<i64: 2, 2048>}, {pipeline_mode = #tpu.pipeline_mode<synchronous>, transform_indices = @transform_1, window_bounds = array<i64: 1, 2048>}, {transform_indices = @transform_2, window_bounds = array<i64: 2, 2048>}]} {
    %c0 = arith.constant 0 : index
    %c0_0 = arith.constant 0 : index
    %0 = vector.load %arg1[%c0, %c0_0] : memref<2x2048xf32, #tpu.memory_space<vmem>>, vector<2x2048xf32>
    %c0_1 = arith.constant 0 : index
    %c0_2 = arith.constant 0 : index
    %1 = vector.load %arg2[%c0_1, %c0_2] : memref<1x2048xf32, #tpu.memory_space<vmem>>, vector<1x2048xf32>
    %2 = vector.broadcast %1 : vector<1x2048xf32> to vector<2x2048xf32>
    %3 = arith.addf %0, %2 : vector<2x2048xf32>
    %c0_3 = arith.constant 0 : index
    %c0_4 = arith.constant 0 : index
    %4 = vector.load %arg3[%c0_3, %c0_4] : memref<2x2048xf32, #tpu.memory_space<vmem>>, vector<2x2048xf32>
    tpu.vector_store %arg3[%c0_3, %c0_4], %3 {strides = array<i32>} : memref<2x2048xf32, #tpu.memory_space<vmem>>, vector<2x2048xf32>,
    return
  }
  func.func @transform_0(%arg0: i32) -> (i32, i32) {
    %c0_i32 = arith.constant 0 : i32
    %c0_i32_0 = arith.constant 0 : i32
    return %arg0, %c0_i32 : i32, i32
  }
  func.func @transform_1(%arg0: i32) -> (i32, i32) {
    %c0_i32 = arith.constant 0 : i32
    %c0_i32_0 = arith.constant 0 : i32
    %c0_i32_1 = arith.constant 0 : i32
    return %c0_i32, %c0_i32_0 : i32, i32
  }
  func.func @transform_2(%arg0: i32) -> (i32, i32) {
    %c0_i32 = arith.constant 0 : i32
    %c0_i32_0 = arith.constant 0 : i32
    return %arg0, %c0_i32 : i32, i32
  }
}

</mosaic_0001>

<llo_original>
// kernel: tpu_custom_call.1
$region0: #{tpu_custom_call.1}
  #allocation0 [shape = 'u32[]', space=smem, size = 0x4, offset = 0x4, fixed_abs, tag = 'smem constant byte address 0x4 - core index']
  #allocation1 [shape = 'u32[72,128]{1,0:T(1,128)}', space=vmem, size = 0x9000, scoped, tag = 'internal scratch']
  %s0 = inlined_call_operand.hbm [shape: f32[2,2048], index: 0, kind: input, shape index: {}, may-alias: {0,2}]
  %s1 = inlined_call_operand.vmem [shape: f32[1,2048], index: 1, kind: input, shape index: {}]
  %s2 = inlined_call_operand.hbm [shape: f32[2,2048], index: 2, kind: output, shape index: {}, may-alias: {0,2}]
  %s3 = sld [smem:[#allocation0]]
  $region22: #{tpu_custom_call.1} parent=0
    _
  %s5 = ssub.s32 1, %s3
  %s6 = scalar_select 0, %s5, %s3
  $region1: #{tpu_custom_call.1} parent=0
    #allocation2 [shape = 'u8[16384]{0}', space=vmem, size = 0x4000, scoped, tag = 'input window, operand 0, single buffered']
    #allocation3 [shape = 's32[1]{0}', space=sflag, size = 0x4, scoped, tag = 'scoped memory for tpu_custom_call.1']
    #allocation4 [shape = 's32[1]{0}', space=sflag, size = 0x4, scoped, tag = 'scoped memory for tpu_custom_call.1']
    #allocation5 [shape = 'u8[16384]{0}', space=vmem, size = 0x4000, scoped, tag = 'output window, operand 0, single buffered']
    %7 = vsyncpa [#allocation3], 0
    %8 = vsyncpa [#allocation4], 0
    // Predicated region
    $region2: #{tpu_custom_call.1} parent=1 // pred_check
      _
    $region3: #{tpu_custom_call.1} parent=1 // pred_check_branch
      %10 = sbr.rel (0) target = $region5
    $region4: #{tpu_custom_call.1} parent=1 // pred_region
      %12 = vsyncadd [#allocation3], 0
      %s14 = sshll.u32 %s0, 4
      %s15 = int_to_ptr.hbm [resolvable:$true] %s14
      %s16 = sshll.u32 [#allocation2], 4
      %s17 = int_to_ptr.vmem [resolvable:$true] %s16
      %19 = dma.hbm_to_vmem [thread:$0]  %s15, 512, %s17, [#allocation3]
    $region5: #{tpu_custom_call.1} parent=1 // pred_fallthru
      _
    // Predicated region
    $region6: #{tpu_custom_call.1} parent=1 // pred_check
      _
    $region7: #{tpu_custom_call.1} parent=1 // pred_check_branch
      %21 = sbr.rel (0) target = $region9
    $region8: #{tpu_custom_call.1} parent=1 // pred_region
      _
    $region9: #{tpu_custom_call.1} parent=1 // pred_fallthru
      _
    // Predicated region
    $region10: #{tpu_custom_call.1} parent=1 // pred_check
      _
    $region11: #{tpu_custom_call.1} parent=1 // pred_check_branch
      %23 = sbr.rel (0) target = $region13
    $region12: #{tpu_custom_call.1} parent=1 // pred_region
      %25 = dma.done [#allocation3], 512
    $region13: #{tpu_custom_call.1} parent=1 // pred_fallthru
      _
    %v26 = vld [vmem:[#allocation2] sm:$0xff]
    %v27 = vld [vmem:[#allocation2 + $0x8] sm:$0xff]
    %v28 = vld [vmem:[#allocation2 + $0x10] sm:$0xff]
    %v29 = vld [vmem:[#allocation2 + $0x18] sm:$0xff]
    %v30 = vld [vmem:[%s1] sm:$0xff]
    %v31 = vld [vmem:[%s1 + $0x8] sm:$0xff]
    %v34 = vperm.slane %v30, 0
    %v35 = vperm.slane %v30, 1
    %v36 = vperm.slane %v30, 2
    %v37 = vperm.slane %v30, 3
    %v38 = vperm.slane %v30, 4
    %v39 = vperm.slane %v30, 5
    %v40 = vperm.slane %v30, 6
    %v41 = vperm.slane %v30, 7
    %v42 = vperm.slane %v31, 0
    %v43 = vperm.slane %v31, 1
    %v44 = vperm.slane %v31, 2
    %v45 = vperm.slane %v31, 3
    %v46 = vperm.slane %v31, 4
    %v47 = vperm.slane %v31, 5
    %v48 = vperm.slane %v31, 6
    %v49 = vperm.slane %v31, 7
    %v50 = vrot.slane %v35, 6
    %v51 = vrot.slane %v36, 4
    %v52 = vrot.slane %v37, 2
    %v53 = vrot.slane %v39, 6
    %v54 = vrot.slane %v40, 4
    %v55 = vrot.slane %v41, 2
    %v56 = vrot.slane %v43, 6
    %v57 = vrot.slane %v44, 4
    %v58 = vrot.slane %v45, 2
    %v59 = vrot.slane %v47, 6
    %v60 = vrot.slane %v48, 4
    %v61 = vrot.slane %v49, 2
    %vm62 = vcmask 1041408
    %v63 = vsel %vm62, %v34, %v50
    %vm64 = vcmask 1045508
    %v65 = vsel %vm64, %v51, %v52
    %vm66 = vcmask 1043456
    %v67 = vsel %vm66, %v63, %v65
    %v68 = vsel %vm62, %v38, %v53
    %v69 = vsel %vm64, %v54, %v55
    %v70 = vsel %vm66, %v68, %v69
    %v71 = vsel %vm62, %v42, %v56
    %v72 = vsel %vm64, %v57, %v58
    %v73 = vsel %vm66, %v71, %v72
    %v74 = vsel %vm62, %v46, %v59
    %v75 = vsel %vm64, %v60, %v61
    %v76 = vsel %vm66, %v74, %v75
    %v81 = vadd.f32 %v26, %v67
    %v82 = vadd.f32 %v27, %v70
    %v83 = vadd.f32 %v28, %v73
    %v84 = vadd.f32 %v29, %v76
    %85 = vst [vmem:[#allocation5] sm:$0xff] %v81
    %86 = vst [vmem:[#allocation5 + $0x8] sm:$0xff] %v82
    %87 = vst [vmem:[#allocation5 + $0x10] sm:$0xff] %v83
    %88 = vst [vmem:[#allocation5 + $0x18] sm:$0xff] %v84
    // Predicated region
    $region14: #{tpu_custom_call.1} parent=1 // pred_check
      _
    $region15: #{tpu_custom_call.1} parent=1 // pred_check_branch
      %90 = sbr.rel (0) target = $region17
    $region16: #{tpu_custom_call.1} parent=1 // pred_region
      %92 = vsyncadd [#allocation4], 0
      %s94 = sshll.u32 [#allocation5], 4
      %s95 = int_to_ptr.vmem [resolvable:$true] %s94
      %s96 = sshll.u32 %s2, 4
      %s97 = int_to_ptr.hbm [resolvable:$true] %s96
      %99 = dma.vmem_to_hbm [thread:$0]  %s95, 512, %s97, [#allocation4]
    $region17: #{tpu_custom_call.1} parent=1 // pred_fallthru
      _
    // Predicated region
    $region18: #{tpu_custom_call.1} parent=1 // pred_check
      _
    $region19: #{tpu_custom_call.1} parent=1 // pred_check_branch
      %101 = sbr.rel (0) target = $region21
    $region20: #{tpu_custom_call.1} parent=1 // pred_region
      %103 = dma.done [#allocation4], 512
    $region21: #{tpu_custom_call.1} parent=1 // pred_fallthru
      _
    %104 = vsyncpa [#allocation3], 1
    %105 = vsyncpa [#allocation4], 1

</llo_original>
